<compile_context>
chip_gen: v5e
topology: v5e:2x2
jax: 0.10.0
libtpu: 0.0.40
codegen_flags: <defaults>
</compile_context>

<pallas_src>
import functools

import jax
import jax.numpy as jnp
from jax.experimental import pallas as pl
from jax.experimental.pallas import tpu as pltpu

NEG_INF = -1e30  # finite "minus infinity" for the running softmax max


# --------------------------------------------------------------------------- #
# Kernel 1: fused QKV projection (tiled matmul, bf16 MXU inputs, f32 accumulate)
# --------------------------------------------------------------------------- #
def qkv_proj_kernel(x_ref, w_ref, o_ref):
    # x_ref: (tm, C) bf16, w_ref: (C, 3C) bf16 (Q columns pre-scaled), o_ref: (tm, 3C) bf16
    o_ref[...] = jnp.dot(
        x_ref[...], w_ref[...], preferred_element_type=jnp.float32
    ).astype(o_ref.dtype)


def qkv_projection(x2d, w, *, tm):
    M, C = x2d.shape
    threeC = w.shape[1]
    return pl.pallas_call(
        qkv_proj_kernel,
        out_shape=jax.ShapeDtypeStruct((M, threeC), jnp.bfloat16),
        grid=(M // tm,),
        in_specs=[
            pl.BlockSpec((tm, C), lambda i: (i, 0)),
            # constant index map: weight stays resident in VMEM (no re-DMA per step)
            pl.BlockSpec((C, threeC), lambda i: (0, 0)),
        ],
        out_specs=pl.BlockSpec((tm, threeC), lambda i: (i, 0)),
        compiler_params=pltpu.CompilerParams(dimension_semantics=("parallel",)),
    )(x2d, w)


# --------------------------------------------------------------------------- #
# Kernel 2: head-batched flash attention (online softmax over kv tiles)
# --------------------------------------------------------------------------- #
def flash_attn_kernel(q_ref, k_ref, v_ref, o_ref, m_sc, l_sc, acc_sc):
    kj = pl.program_id(2)

    @pl.when(kj == 0)
    def _init():
        m_sc[...] = jnp.full(m_sc.shape, NEG_INF, jnp.float32)
        l_sc[...] = jnp.zeros(l_sc.shape, jnp.float32)
        acc_sc[...] = jnp.zeros(acc_sc.shape, jnp.float32)

    q = q_ref[0]  # (H, tq, hd) bf16, scale already folded into the weight
    k = k_ref[0]  # (H, tk, hd) bf16

    # All heads in one batched MXU matmul; scores kept in f32.
    s = jnp.einsum("hqd,hkd->hqk", q, k, preferred_element_type=jnp.float32)

    m_prev = m_sc[...]                                        # (H, tq, 1) f32
    m_new = jnp.maximum(m_prev, s.max(axis=-1, keepdims=True))
    alpha = jnp.exp(m_prev - m_new)                           # f32 (EUP)
    p = jnp.exp(s - m_new)                                    # (H, tq, tk) f32

    l_sc[...] = alpha * l_sc[...] + p.sum(axis=-1, keepdims=True)
    acc_sc[...] = alpha * acc_sc[...] + jnp.einsum(
        "hqk,hkd->hqd",
        p.astype(v_ref.dtype),                                # bf16 MXU input
        v_ref[0],
        preferred_element_type=jnp.float32,
    )
    m_sc[...] = m_new

    @pl.when(kj == pl.num_programs(2) - 1)
    def _finalize():
        inv = pl.reciprocal(l_sc[...], approx=True)           # EUP slot, ~free
        o_ref[0] = (acc_sc[...] * inv).astype(o_ref.dtype)


def flash_attention(q, k, v, *, tq, tk, out_dtype):
    B, H, N, hd = q.shape
    assert N % tq == 0 and N % tk == 0
    return pl.pallas_call(
        flash_attn_kernel,
        out_shape=jax.ShapeDtypeStruct((B, H, N, hd), out_dtype),
        grid=(B, N // tq, N // tk),
        in_specs=[
            pl.BlockSpec((1, H, tq, hd), lambda b, qi, kj: (b, 0, qi, 0)),
            pl.BlockSpec((1, H, tk, hd), lambda b, qi, kj: (b, 0, kj, 0)),
            pl.BlockSpec((1, H, tk, hd), lambda b, qi, kj: (b, 0, kj, 0)),
        ],
        out_specs=pl.BlockSpec((1, H, tq, hd), lambda b, qi, kj: (b, 0, qi, 0)),
        scratch_shapes=[
            pltpu.VMEM((H, tq, 1), jnp.float32),   # running max
            pltpu.VMEM((H, tq, 1), jnp.float32),   # running denom
            pltpu.VMEM((H, tq, hd), jnp.float32),  # f32 accumulator
        ],
        compiler_params=pltpu.CompilerParams(
            dimension_semantics=("parallel", "parallel", "arbitrary")
        ),
    )(q, k, v)


# --------------------------------------------------------------------------- #
# Wrapper: matches the PyTorch forward's returned value
# --------------------------------------------------------------------------- #
def self_attention(x, w_qkv, num_heads):
    B, N, C = x.shape
    assert C % num_heads == 0
    hd = C // num_heads
    scale = hd ** (-0.5)

    # Fold the softmax scale into the Q columns of the fused weight (free).
    w_scaled = w_qkv.at[:, :C].multiply(scale)

    # bf16 MXU operands; every dot accumulates in f32.
    xb = x.astype(jnp.bfloat16).reshape(B * N, C)
    wb = w_scaled.astype(jnp.bfloat16)

    M = B * N
    tm = 256 if M % 256 == 0 else M
    qkv = qkv_projection(xb, wb, tm=tm)                       # (B*N, 3C) bf16

    # Head split = wrapper-side layout plumbing (keeps hd-wide slicing out of the kernel).
    qkv = qkv.reshape(B, N, 3, num_heads, hd).transpose(2, 0, 3, 1, 4)
    q, k, v = qkv[0], qkv[1], qkv[2]                          # (B, H, N, hd) bf16

    tile = 256 if N % 256 == 0 else N
    out = flash_attention(q, k, v, tq=tile, tk=tile, out_dtype=x.dtype)  # (B,H,N,hd)

    # Merge heads: (attn @ v).transpose(1, 2).reshape(B, N, C)
    return out.transpose(0, 2, 1, 3).reshape(B, N, C)


def reference(x, w_qkv, num_heads):
    """Plain-JAX f32 mirror of the PyTorch forward (returns pre-proj attention output)."""
    B, N, C = x.shape
    hd = C // num_heads
    scale = hd ** (-0.5)
    qkv = x @ w_qkv
    qkv = qkv.reshape(B, N, 3, num_heads, hd).transpose(2, 0, 3, 1, 4)
    q, k, v = qkv[0], qkv[1], qkv[2]
    attn = jnp.einsum("bhqd,bhkd->bhqk", q, k) * scale
    attn = jax.nn.softmax(attn, axis=-1)
    out = jnp.einsum("bhqk,bhkd->bhqd", attn, v)
    return out.transpose(0, 2, 1, 3).reshape(B, N, C)


if __name__ == "__main__":
    B, N, C = 2, 16, 32
    num_heads = 4            # module default is 9; pick 4 so C % num_heads == 0

    key = jax.random.PRNGKey(0)
    kx, kq = jax.random.split(key, 2)

    x = jax.random.normal(kx, (B, N, C), dtype=jnp.float32)

    # nn.Linear(dim, 3*dim, bias=False): weight (3C, C); store transposed (C, 3C).
    bound = 1.0 / (C ** 0.5)
    w_qkv_pt = jax.random.uniform(kq, (3 * C, C), minval=-bound, maxval=bound,
                                  dtype=jnp.float32)
    w_qkv = w_qkv_pt.T

    attn_fn = jax.jit(functools.partial(self_attention, num_heads=num_heads))
    out = jax.block_until_ready(attn_fn(x, w_qkv))

    ref = jax.block_until_ready(reference(x, w_qkv, num_heads))
    assert out.shape == (B, N, C)
    # bf16 MXU inputs + approx reciprocal => slightly looser tolerance than pure f32.
    assert jnp.allclose(out, ref, rtol=2e-2, atol=2e-2), "mismatch vs reference"

    print("KERNEL_OK")
</pallas_src>

<mosaic_0001>
module attributes {stable_mosaic.version = 11 : i64} {
  func.func @qkv_proj_kernel(%arg0: i32, %arg1: memref<32x32xbf16, #tpu.memory_space<vmem>>, %arg2: memref<32x96xbf16, #tpu.memory_space<vmem>>, %arg3: memref<32x96xbf16, #tpu.memory_space<vmem>>) attributes {dimension_semantics = [#tpu.dimension_semantics<parallel>], iteration_bounds = array<i64: 1>, scalar_prefetch = 0 : i64, scratch_operands = 0 : i64, tpu.core_type = #tpu.core_type<tc>, window_params = [{transform_indices = @transform_0, window_bounds = array<i64: 32, 32>}, {pipeline_mode = #tpu.pipeline_mode<synchronous>, transform_indices = @transform_1, window_bounds = array<i64: 32, 96>}, {transform_indices = @transform_2, window_bounds = array<i64: 32, 96>}]} {
    %c0 = arith.constant 0 : index
    %c0_0 = arith.constant 0 : index
    %0 = vector.load %arg1[%c0, %c0_0] : memref<32x32xbf16, #tpu.memory_space<vmem>>, vector<32x32xbf16>
    %c0_1 = arith.constant 0 : index
    %c0_2 = arith.constant 0 : index
    %1 = vector.load %arg2[%c0_1, %c0_2] : memref<32x96xbf16, #tpu.memory_space<vmem>>, vector<32x96xbf16>
    %cst = arith.constant dense<0.000000e+00> : vector<32x96xf32>
    %2 = tpu.matmul %0, %1, %cst {dimension_numbers = #tpu.dot_dimension_numbers<[1], [0], [0], [1], [0, 0, 1, 1], [], []>} : vector<32x32xbf16>, vector<32x96xbf16>, vector<32x96xf32> -> vector<32x96xf32>
    %3 = arith.truncf %2 : vector<32x96xf32> to vector<32x96xbf16>
    %c0_3 = arith.constant 0 : index
    %c0_4 = arith.constant 0 : index
    %4 = vector.load %arg3[%c0_3, %c0_4] : memref<32x96xbf16, #tpu.memory_space<vmem>>, vector<32x96xbf16>
    tpu.vector_store %arg3[%c0_3, %c0_4], %3 {strides = array<i32>} : memref<32x96xbf16, #tpu.memory_space<vmem>>, vector<32x96xbf16>,
    return
  }
  func.func @transform_0(%arg0: i32) -> (i32, i32) {
    %c0_i32 = arith.constant 0 : i32
    %c0_i32_0 = arith.constant 0 : i32
    return %arg0, %c0_i32 : i32, i32
  }
  func.func @transform_1(%arg0: i32) -> (i32, i32) {
    %c0_i32 = arith.constant 0 : i32
    %c0_i32_0 = arith.constant 0 : i32
    %c0_i32_1 = arith.constant 0 : i32
    return %c0_i32, %c0_i32_0 : i32, i32
  }
  func.func @transform_2(%arg0: i32) -> (i32, i32) {
    %c0_i32 = arith.constant 0 : i32
    %c0_i32_0 = arith.constant 0 : i32
    return %arg0, %c0_i32 : i32, i32
  }
}

module attributes {stable_mosaic.version = 11 : i64} {
  func.func @flash_attn_kernel(%arg0: i32, %arg1: i32, %arg2: i32, %arg3: memref<1x4x16x8xbf16, #tpu.memory_space<vmem>>, %arg4: memref<1x4x16x8xbf16, #tpu.memory_space<vmem>>, %arg5: memref<1x4x16x8xbf16, #tpu.memory_space<vmem>>, %arg6: memref<1x4x16x8xf32, #tpu.memory_space<vmem>>, %arg7: memref<4x16x1xf32, #tpu.memory_space<vmem>>, %arg8: memref<4x16x1xf32, #tpu.memory_space<vmem>>, %arg9: memref<4x16x8xf32, #tpu.memory_space<vmem>>) attributes {dimension_semantics = [#tpu.dimension_semantics<parallel>, #tpu.dimension_semantics<parallel>, #tpu.dimension_semantics<arbitrary>], iteration_bounds = array<i64: 2, 1, 1>, scalar_prefetch = 0 : i64, scratch_operands = 3 : i64, tpu.core_type = #tpu.core_type<tc>, window_params = [{transform_indices = @transform_0, window_bounds = array<i64: 1, 4, 16, 8>}, {transform_indices = @transform_1, window_bounds = array<i64: 1, 4, 16, 8>}, {transform_indices = @transform_2, window_bounds = array<i64: 1, 4, 16, 8>}, {transform_indices = @transform_3, window_bounds = array<i64: 1, 4, 16, 8>}]} {
    %c0_i32 = arith.constant 0 : i32
    %0 = arith.cmpi eq, %arg2, %c0_i32 : i32
    %1 = arith.extui %0 : i1 to i32
    %c0_i32_0 = arith.constant 0 : i32
    %2 = arith.cmpi ne, %1, %c0_i32_0 : i32
    scf.if %2 {
      %cst_35 = arith.constant -1.000000e+30 : f32
      %36 = vector.broadcast %cst_35 : f32 to vector<4x16x1xf32>
      %c0_36 = arith.constant 0 : index
      %c0_37 = arith.constant 0 : index
      %c0_38 = arith.constant 0 : index
      %37 = vector.load %arg7[%c0_36, %c0_37, %c0_38] : memref<4x16x1xf32, #tpu.memory_space<vmem>>, vector<4x16x1xf32>
      tpu.vector_store %arg7[%c0_36, %c0_37, %c0_38], %36 {strides = array<i32>} : memref<4x16x1xf32, #tpu.memory_space<vmem>>, vector<4x16x1xf32>,
      %cst_39 = arith.constant 0.000000e+00 : f32
      %38 = vector.broadcast %cst_39 : f32 to vector<4x16x1xf32>
      %c0_40 = arith.constant 0 : index
      %c0_41 = arith.constant 0 : index
      %c0_42 = arith.constant 0 : index
      %39 = vector.load %arg8[%c0_40, %c0_41, %c0_42] : memref<4x16x1xf32, #tpu.memory_space<vmem>>, vector<4x16x1xf32>
      tpu.vector_store %arg8[%c0_40, %c0_41, %c0_42], %38 {strides = array<i32>} : memref<4x16x1xf32, #tpu.memory_space<vmem>>, vector<4x16x1xf32>,
      %cst_43 = arith.constant 0.000000e+00 : f32
      %40 = vector.broadcast %cst_43 : f32 to vector<4x16x8xf32>
      %c0_44 = arith.constant 0 : index
      %c0_45 = arith.constant 0 : index
      %c0_46 = arith.constant 0 : index
      %41 = vector.load %arg9[%c0_44, %c0_45, %c0_46] : memref<4x16x8xf32, #tpu.memory_space<vmem>>, vector<4x16x8xf32>
      tpu.vector_store %arg9[%c0_44, %c0_45, %c0_46], %40 {strides = array<i32>} : memref<4x16x8xf32, #tpu.memory_space<vmem>>, vector<4x16x8xf32>,
    } else {
    }
    %c0 = arith.constant 0 : index
    %c0_1 = arith.constant 0 : index
    %c0_2 = arith.constant 0 : index
    %c0_3 = arith.constant 0 : index
    %3 = vector.load %arg3[%c0, %c0_1, %c0_2, %c0_3] : memref<1x4x16x8xbf16, #tpu.memory_space<vmem>>, vector<1x4x16x8xbf16>
    %4 = vector.shape_cast %3 : vector<1x4x16x8xbf16> to vector<4x16x8xbf16>
    %c0_4 = arith.constant 0 : index
    %c0_5 = arith.constant 0 : index
    %c0_6 = arith.constant 0 : index
    %c0_7 = arith.constant 0 : index
    %5 = vector.load %arg4[%c0_4, %c0_5, %c0_6, %c0_7] : memref<1x4x16x8xbf16, #tpu.memory_space<vmem>>, vector<1x4x16x8xbf16>
    %6 = vector.shape_cast %5 : vector<1x4x16x8xbf16> to vector<4x16x8xbf16>
    "tpu.trace_start"() <{level = 10 : i32, message = "hqd,hkd->hqk"}> : () -> ()
    %cst = arith.constant dense<0.000000e+00> : vector<4x16x16xf32>
    %7 = tpu.matmul %4, %6, %cst {dimension_numbers = #tpu.dot_dimension_numbers<[2], [2], [1], [1], [0, 0, 0, 1, 1, 1], [0], [0]>} : vector<4x16x8xbf16>, vector<4x16x8xbf16>, vector<4x16x16xf32> -> vector<4x16x16xf32>
    "tpu.trace_stop"() : () -> ()
    %c0_8 = arith.constant 0 : index
    %c0_9 = arith.constant 0 : index
    %c0_10 = arith.constant 0 : index
    %8 = vector.load %arg7[%c0_8, %c0_9, %c0_10] : memref<4x16x1xf32, #tpu.memory_space<vmem>>, vector<4x16x1xf32>
    %cst_11 = arith.constant dense<0xFF800000> : vector<4x16xf32>
    %9 = vector.multi_reduction <maximumf>, %7, %cst_11 [2] : vector<4x16x16xf32> to vector<4x16xf32>
    %10 = vector.shape_cast %9 : vector<4x16xf32> to vector<4x16x1xf32>
    %11 = arith.maximumf %8, %10 : vector<4x16x1xf32>
    %12 = arith.subf %8, %11 : vector<4x16x1xf32>
    %13 = math.exp %12 : vector<4x16x1xf32>
    %14 = vector.broadcast %11 : vector<4x16x1xf32> to vector<4x16x16xf32>
    %15 = arith.subf %7, %14 : vector<4x16x16xf32>
    %16 = math.exp %15 : vector<4x16x16xf32>
    %c0_12 = arith.constant 0 : index
    %c0_13 = arith.constant 0 : index
    %c0_14 = arith.constant 0 : index
    %17 = vector.load %arg8[%c0_12, %c0_13, %c0_14] : memref<4x16x1xf32, #tpu.memory_space<vmem>>, vector<4x16x1xf32>
    %18 = arith.mulf %13, %17 : vector<4x16x1xf32>
    %cst_15 = arith.constant dense<0.000000e+00> : vector<4x16xf32>
    %19 = vector.multi_reduction <add>, %16, %cst_15 [2] : vector<4x16x16xf32> to vector<4x16xf32>
    %20 = vector.shape_cast %19 : vector<4x16xf32> to vector<4x16x1xf32>
    %21 = arith.addf %18, %20 : vector<4x16x1xf32>
    %c0_16 = arith.constant 0 : index
    %c0_17 = arith.constant 0 : index
    %c0_18 = arith.constant 0 : index
    %22 = vector.load %arg8[%c0_16, %c0_17, %c0_18] : memref<4x16x1xf32, #tpu.memory_space<vmem>>, vector<4x16x1xf32>
    tpu.vector_store %arg8[%c0_16, %c0_17, %c0_18], %21 {strides = array<i32>} : memref<4x16x1xf32, #tpu.memory_space<vmem>>, vector<4x16x1xf32>,
    %c0_19 = arith.constant 0 : index
    %c0_20 = arith.constant 0 : index
    %c0_21 = arith.constant 0 : index
    %23 = vector.load %arg9[%c0_19, %c0_20, %c0_21] : memref<4x16x8xf32, #tpu.memory_space<vmem>>, vector<4x16x8xf32>
    %24 = vector.broadcast %13 : vector<4x16x1xf32> to vector<4x16x8xf32>
    %25 = arith.mulf %24, %23 : vector<4x16x8xf32>
    %26 = arith.truncf %16 : vector<4x16x16xf32> to vector<4x16x16xbf16>
    %c0_22 = arith.constant 0 : index
    %c0_23 = arith.constant 0 : index
    %c0_24 = arith.constant 0 : index
    %c0_25 = arith.constant 0 : index
    %27 = vector.load %arg5[%c0_22, %c0_23, %c0_24, %c0_25] : memref<1x4x16x8xbf16, #tpu.memory_space<vmem>>, vector<1x4x16x8xbf16>
    %28 = vector.shape_cast %27 : vector<1x4x16x8xbf16> to vector<4x16x8xbf16>
    "tpu.trace_start"() <{level = 10 : i32, message = "hqk,hkd->hqd"}> : () -> ()
    %cst_26 = arith.constant dense<0.000000e+00> : vector<4x16x8xf32>
    %29 = tpu.matmul %26, %28, %cst_26 {dimension_numbers = #tpu.dot_dimension_numbers<[2], [1], [1], [2], [0, 0, 0, 1, 1, 2], [0], [0]>} : vector<4x16x16xbf16>, vector<4x16x8xbf16>, vector<4x16x8xf32> -> vector<4x16x8xf32>
    "tpu.trace_stop"() : () -> ()
    %30 = arith.addf %25, %29 : vector<4x16x8xf32>
    %c0_27 = arith.constant 0 : index
    %c0_28 = arith.constant 0 : index
    %c0_29 = arith.constant 0 : index
    %31 = vector.load %arg9[%c0_27, %c0_28, %c0_29] : memref<4x16x8xf32, #tpu.memory_space<vmem>>, vector<4x16x8xf32>
    tpu.vector_store %arg9[%c0_27, %c0_28, %c0_29], %30 {strides = array<i32>} : memref<4x16x8xf32, #tpu.memory_space<vmem>>, vector<4x16x8xf32>,
    %c0_30 = arith.constant 0 : index
    %c0_31 = arith.constant 0 : index
    %c0_32 = arith.constant 0 : index
    %32 = vector.load %arg7[%c0_30, %c0_31, %c0_32] : memref<4x16x1xf32, #tpu.memory_space<vmem>>, vector<4x16x1xf32>
    tpu.vector_store %arg7[%c0_30, %c0_31, %c0_32], %11 {strides = array<i32>} : memref<4x16x1xf32, #tpu.memory_space<vmem>>, vector<4x16x1xf32>,
    %c0_i32_33 = arith.constant 0 : i32
    %33 = arith.cmpi eq, %arg2, %c0_i32_33 : i32
    %34 = arith.extui %33 : i1 to i32
    %c0_i32_34 = arith.constant 0 : i32
    %35 = arith.cmpi ne, %34, %c0_i32_34 : i32
    scf.if %35 {
      %c0_35 = arith.constant 0 : index
      %c0_36 = arith.constant 0 : index
      %c0_37 = arith.constant 0 : index
      %36 = vector.load %arg8[%c0_35, %c0_36, %c0_37] : memref<4x16x1xf32, #tpu.memory_space<vmem>>, vector<4x16x1xf32>
      %37 = tpu.reciprocal %36 {approx = true} : vector<4x16x1xf32> -> vector<4x16x1xf32>
      %c0_38 = arith.constant 0 : index
      %c0_39 = arith.constant 0 : index
      %c0_40 = arith.constant 0 : index
      %38 = vector.load %arg9[%c0_38, %c0_39, %c0_40] : memref<4x16x8xf32, #tpu.memory_space<vmem>>, vector<4x16x8xf32>
      %39 = vector.broadcast %37 : vector<4x16x1xf32> to vector<4x16x8xf32>
      %40 = arith.mulf %38, %39 : vector<4x16x8xf32>
      %c0_41 = arith.constant 0 : index
      %c0_42 = arith.constant 0 : index
      %c0_43 = arith.constant 0 : index
      %c0_44 = arith.constant 0 : index
      %41 = vector.load %arg6[%c0_41, %c0_42, %c0_43, %c0_44] : memref<1x4x16x8xf32, #tpu.memory_space<vmem>>, vector<1x4x16x8xf32>
      %42 = vector.shape_cast %41 : vector<1x4x16x8xf32> to vector<4x16x8xf32>
      %43 = vector.shape_cast %40 : vector<4x16x8xf32> to vector<1x4x16x8xf32>
      tpu.vector_store %arg6[%c0_41, %c0_42, %c0_43, %c0_44], %43 {strides = array<i32>} : memref<1x4x16x8xf32, #tpu.memory_space<vmem>>, vector<1x4x16x8xf32>,
    } else {
    }
    return
  }
  func.func @transform_0(%arg0: i32, %arg1: i32, %arg2: i32) -> (i32, i32, i32, i32) {
    %c0_i32 = arith.constant 0 : i32
    %c0_i32_0 = arith.constant 0 : i32
    %c0_i32_1 = arith.constant 0 : i32
    return %arg0, %c0_i32, %arg1, %c0_i32_0 : i32, i32, i32, i32
  }
  func.func @transform_1(%arg0: i32, %arg1: i32, %arg2: i32) -> (i32, i32, i32, i32) {
    %c0_i32 = arith.constant 0 : i32
    %c0_i32_0 = arith.constant 0 : i32
    %c0_i32_1 = arith.constant 0 : i32
    return %arg0, %c0_i32, %arg2, %c0_i32_0 : i32, i32, i32, i32
  }
  func.func @transform_2(%arg0: i32, %arg1: i32, %arg2: i32) -> (i32, i32, i32, i32) {
    %c0_i32 = arith.constant 0 : i32
    %c0_i32_0 = arith.constant 0 : i32
    %c0_i32_1 = arith.constant 0 : i32
    return %arg0, %c0_i32, %arg2, %c0_i32_0 : i32, i32, i32, i32
  }
  func.func @transform_3(%arg0: i32, %arg1: i32, %arg2: i32) -> (i32, i32, i32, i32) {
    %c0_i32 = arith.constant 0 : i32
    %c0_i32_0 = arith.constant 0 : i32
    %c0_i32_1 = arith.constant 0 : i32
    return %arg0, %c0_i32, %arg1, %c0_i32_0 : i32, i32, i32, i32
  }
}

</mosaic_0001>

<llo_original>
// kernel: self_attention.2
$region0: #{self_attention.2}
  #allocation0 [shape = 'u32[]', space=smem, size = 0x4, offset = 0x4, fixed_abs, tag = 'smem constant byte address 0x4 - core index']
  #allocation1 [shape = 'u32[72,128]{1,0:T(1,128)}', space=vmem, size = 0x9000, scoped, tag = 'internal scratch']
  %s0 = inlined_call_operand.vmem [shape: bf16[32,32], index: 0, kind: input, shape index: {}]
  %s1 = inlined_call_operand.vmem [shape: bf16[32,96], index: 1, kind: input, shape index: {}]
  %s2 = inlined_call_operand.vmem [shape: bf16[32,96], index: 2, kind: output, shape index: {}]
  %s3 = sld [smem:[#allocation0]]
  $region18: #{self_attention.2} parent=0
    _
  %s5 = ssub.s32 1, %s3
  %s6 = scalar_select 0, %s5, %s3
  // Predicated region
  $region2: #{self_attention.2} parent=0 // pred_check
    _
  $region3: #{self_attention.2} parent=0 // pred_check_branch
    %8 = sbr.rel (0) target = $region5
  $region4: #{self_attention.2} parent=0 // pred_region
    _
  $region5: #{self_attention.2} parent=0 // pred_fallthru
    _
  // Predicated region
  $region6: #{self_attention.2} parent=0 // pred_check
    _
  $region7: #{self_attention.2} parent=0 // pred_check_branch
    %10 = sbr.rel (0) target = $region9
  $region8: #{self_attention.2} parent=0 // pred_region
    _
  $region9: #{self_attention.2} parent=0 // pred_fallthru
    _
  %v12 = vld [vmem:[%s0] sm:$0xf]
  %v13 = vld [vmem:[%s0 + $0x4] sm:$0xf]
  %v14 = vld [vmem:[%s0 + $0x8] sm:$0xf]
  %v15 = vld [vmem:[%s0 + $0xc] sm:$0xf]
  %v16 = vld [vmem:[%s1] sm:$0xf]
  %v17 = vld [vmem:[%s1 + $0x4] sm:$0xf]
  %v18 = vld [vmem:[%s1 + $0x8] sm:$0xf]
  %v19 = vld [vmem:[%s1 + $0xc] sm:$0xf]
  %v24 = vunpack.c.l.b16 %v12
  %v25 = vunpack.c.l.b16 %v13
  %v26 = vunpack.c.l.b16 %v14
  %v27 = vunpack.c.l.b16 %v15
  %v28 = vpack.c.b16 %v25, %v24
  %v29 = vpack.c.b16 %v27, %v26
  %v34 = vunpack.c.l.b16 %v16
  %v35 = vunpack.c.l.b16 %v17
  %v36 = vunpack.c.l.b16 %v18
  %v37 = vunpack.c.l.b16 %v19
  %v38 = vpack.c.b16 %v35, %v34
  %v39 = vpack.c.b16 %v37, %v36
  %vm42 = vcmask 261120
  %v44 = vsel %vm42, %v28, 0
  %v47 = vsel %vm42, %v29, 0
  %49 = vmatpush.bf16.msra.mxu0 0
  %50 = vmatpush.bf16.msra.mxu0 0
  %51 = vmatpush.bf16.msra.mxu0 0
  %52 = vmatpush.bf16.msra.mxu0 0
  %53 = vmatpush.bf16.msra.mxu0 0
  %54 = vmatpush.bf16.msra.mxu0 0
  %55 = vmatpush.bf16.msra.mxu0 %v39
  %56 = vmatpush.bf16.msra.mxu0 %v38
  %57 = vmatmul.bf16.gmra.mxu0 %v44
  %v58 = vpop.f32.mrf.mxu0
  %v59 = vadd.f32 0.0, %v58
  %v60 = vpop.f32.mrf.mxu0
  %v61 = vadd.f32 0.0, %v60
  %62 = vmatmul.bf16.gmra.mxu0 %v47
  %v63 = vpop.f32.mrf.mxu0
  %v64 = vadd.f32 0.0, %v63
  %v65 = vpop.f32.mrf.mxu0
  %v66 = vadd.f32 0.0, %v65
  %67 = vdwg.mxu0
  %v68 = vpack.c.bf16 %v59, %v59
  %v69 = vpack.c.bf16 %v61, %v61
  %v70 = vpack.c.bf16 %v64, %v64
  %v71 = vpack.c.bf16 %v66, %v66
  %vm72 = vcmask 781312
  %73 = vst.msk [vmem:[%s2] sm:$0xf] %vm72, %v68
  %74 = vst.msk [vmem:[%s2 + $0x4] sm:$0xf] %vm72, %v69
  %75 = vst.msk [vmem:[%s2 + $0x8] sm:$0xf] %vm72, %v70
  %76 = vst.msk [vmem:[%s2 + $0xc] sm:$0xf] %vm72, %v71
  // Predicated region
  $region10: #{self_attention.2} parent=0 // pred_check
    _
  $region11: #{self_attention.2} parent=0 // pred_check_branch
    %78 = sbr.rel (0) target = $region13
  $region12: #{self_attention.2} parent=0 // pred_region
    _
  $region13: #{self_attention.2} parent=0 // pred_fallthru
    _
  // Predicated region
  $region14: #{self_attention.2} parent=0 // pred_check
    _
  $region15: #{self_attention.2} parent=0 // pred_check_branch
    %80 = sbr.rel (0) target = $region17
  $region16: #{self_attention.2} parent=0 // pred_region
    _
  $region17: #{self_attention.2} parent=0 // pred_fallthru
    _

// kernel: self_attention.3
$region0: #{self_attention.3}
  #allocation0 [shape = 'u32[]', space=smem, size = 0x4, offset = 0x4, fixed_abs, tag = 'smem constant byte address 0x4 - core index']
  #allocation1 [shape = 'u32[72,128]{1,0:T(1,128)}', space=vmem, size = 0x9000, scoped, tag = 'internal scratch']
  #allocation2 [shape = 'f32[4,16,1]{2,1,0:T(8,128)}', space=vmem, size = 0x8000, scoped, tag = 'scratch operand']
  #allocation3 [shape = 'f32[4,16,1]{2,1,0:T(8,128)}', space=vmem, size = 0x8000, scoped, tag = 'scratch operand']
  #allocation4 [shape = 'f32[4,16,8]{2,1,0:T(8,128)}', space=vmem, size = 0x8000, scoped, tag = 'scratch operand']
  %s0 = inlined_call_operand.vmem [shape: bf16[2,4,16,8], index: 0, kind: input, shape index: {}]
  %s1 = inlined_call_operand.vmem [shape: bf16[2,4,16,8], index: 1, kind: input, shape index: {}]
  %s2 = inlined_call_operand.vmem [shape: bf16[2,4,16,8], index: 2, kind: input, shape index: {}]
  %s3 = inlined_call_operand.vmem [shape: f32[2,4,16,8], index: 3, kind: output, shape index: {}]
  %s4 = sld [smem:[#allocation0]]
  $region53: #{self_attention.3} parent=0
    _
  %s6 = ssub.s32 1, %s4
  %s7 = scalar_select 0, %s6, %s4
  loop: start=0, step=1, limit=4
  $region2: #{self_attention.3} parent=0 // loop_pre_header
    _
  $region3: #{self_attention.3} parent=0 // loop_header
    %s9 = sphi 0, %s13
    %p10 = scmp.ge.s32.totalorder %s9, 4
    %s16 = sphi 0, %s35
    %s17 = sphi 0, %s31
    %s18 = sphi 0, %s27
    %s19 = sphi 0, %s16
    %s20 = sphi 0, %s17
    %s21 = sphi 0, %s18
    %s22 = sphi 0, %s19
    %s23 = sphi 0, %s20
    %s24 = sphi 0, %s21
    %s40 = sphi 0, %s42
    %s43 = sphi 0, %s40
    %s44 = sphi 0, %s43
    %s60 = sphi 0, %s44
    %s68 = sphi 0, %s70
    %s71 = sphi 0, %s68
    %s72 = sphi 0, %s71
    %s88 = sphi 0, %s72
    %s96 = sphi 0, %s98
    %s99 = sphi 0, %s96
    %s100 = sphi 0, %s99
    %s116 = sphi 0, %s100
    %s124 = sphi 0, %s126
    %s127 = sphi 0, %s124
    %s128 = sphi 0, %s127
    %s144 = sphi 0, %s128
  $region4: #{self_attention.3} parent=0 // loop_header_branch
    %12 = sbr.rel (%p10) target = $region8
  $region5: #{self_attention.3} parent=0 // loop_body
    %s14 = ssub.s32 %s9, 1
    %s15 = ssub.s32 %s9, 2
    %s25 = sadd.s32 1, %s18
    %p26 = scmp.ge.s32.totalorder %s25, 1
    %s27 = scalar_select %p26, 0, %s25
    %s28 = sadd.s32 1, %s17
    %s29 = scalar_select %p26, %s28, %s17
    %p30 = scmp.ge.s32.totalorder %s29, 1
    %s31 = scalar_select %p30, 0, %s29
    %s32 = sadd.s32 1, %s16
    %s33 = scalar_select %p30, %s32, %s16
    %p34 = scmp.ge.s32.totalorder %s33, 2
    %s35 = scalar_select %p34, 0, %s33
    %s36 = ssub.s32 %s16, %s35
    %s37 = ssub.s32 %s17, %s31
    %s38 = sor.u32 %s36, %s37
    %p39 = scmp.eq.s32.totalorder %s38, 0
    %s41 = sadd.s32 %s40, 1
    %s42 = scalar_select %p39, %s40, %s41
    %p45 = pneg %p39
    %p46 = scmp.eq.s32.totalorder %s9, 1
    %p47 = por %p45, %p46
    %p48 = scmp.ne.s32.totalorder %s40, %s43
    %p49 = scmp.eq.s32.totalorder %s9, 0
    %p50 = por %p48, %p49
    %p51 = scmp.ne.s32.totalorder %s40, %s43
    %p52 = scmp.eq.s32.totalorder %s14, 1
    %p53 = por %p51, %p52
    %p54 = scmp.ne.s32.totalorder %s43, %s44
    %p55 = scmp.eq.s32.totalorder %s14, 0
    %p56 = por %p54, %p55
    %p57 = scmp.ne.s32.totalorder %s43, %s44
    %p58 = scmp.eq.s32.totalorder %s15, 1
    %p59 = por %p57, %p58
    %p61 = scmp.ne.s32.totalorder %s44, %s60
    %p62 = scmp.eq.s32.totalorder %s15, 0
    %p63 = por %p61, %p62
    %s64 = ssub.s32 %s16, %s35
    %s65 = ssub.s32 %s18, %s27
    %s66 = sor.u32 %s64, %s65
    %p67 = scmp.eq.s32.totalorder %s66, 0
    %s69 = sadd.s32 %s68, 1
    %s70 = scalar_select %p67, %s68, %s69
    %p73 = pneg %p67
    %p74 = scmp.eq.s32.totalorder %s9, 1
    %p75 = por %p73, %p74
    %p76 = scmp.ne.s32.totalorder %s68, %s71
    %p77 = scmp.eq.s32.totalorder %s9, 0
    %p78 = por %p76, %p77
    %p79 = scmp.ne.s32.totalorder %s68, %s71
    %p80 = scmp.eq.s32.totalorder %s14, 1
    %p81 = por %p79, %p80
    %p82 = scmp.ne.s32.totalorder %s71, %s72
    %p83 = scmp.eq.s32.totalorder %s14, 0
    %p84 = por %p82, %p83
    %p85 = scmp.ne.s32.totalorder %s71, %s72
    %p86 = scmp.eq.s32.totalorder %s15, 1
    %p87 = por %p85, %p86
    %p89 = scmp.ne.s32.totalorder %s72, %s88
    %p90 = scmp.eq.s32.totalorder %s15, 0
    %p91 = por %p89, %p90
    %s92 = ssub.s32 %s16, %s35
    %s93 = ssub.s32 %s18, %s27
    %s94 = sor.u32 %s92, %s93
    %p95 = scmp.eq.s32.totalorder %s94, 0
    %s97 = sadd.s32 %s96, 1
    %s98 = scalar_select %p95, %s96, %s97
    %p101 = pneg %p95
    %p102 = scmp.eq.s32.totalorder %s9, 1
    %p103 = por %p101, %p102
    %p104 = scmp.ne.s32.totalorder %s96, %s99
    %p105 = scmp.eq.s32.totalorder %s9, 0
    %p106 = por %p104, %p105
    %p107 = scmp.ne.s32.totalorder %s96, %s99
    %p108 = scmp.eq.s32.totalorder %s14, 1
    %p109 = por %p107, %p108
    %p110 = scmp.ne.s32.totalorder %s99, %s100
    %p111 = scmp.eq.s32.totalorder %s14, 0
    %p112 = por %p110, %p111
    %p113 = scmp.ne.s32.totalorder %s99, %s100
    %p114 = scmp.eq.s32.totalorder %s15, 1
    %p115 = por %p113, %p114
    %p117 = scmp.ne.s32.totalorder %s100, %s116
    %p118 = scmp.eq.s32.totalorder %s15, 0
    %p119 = por %p117, %p118
    %s120 = ssub.s32 %s16, %s35
    %s121 = ssub.s32 %s17, %s31
    %s122 = sor.u32 %s120, %s121
    %p123 = scmp.eq.s32.totalorder %s122, 0
    %s125 = sadd.s32 %s124, 1
    %s126 = scalar_select %p123, %s124, %s125
    %p129 = pneg %p123
    %p130 = scmp.eq.s32.totalorder %s9, 1
    %p131 = por %p129, %p130
    %p132 = scmp.ne.s32.totalorder %s124, %s127
    %p133 = scmp.eq.s32.totalorder %s9, 0
    %p134 = por %p132, %p133
    %p135 = scmp.ne.s32.totalorder %s124, %s127
    %p136 = scmp.eq.s32.totalorder %s14, 1
    %p137 = por %p135, %p136
    %p138 = scmp.ne.s32.totalorder %s127, %s128
    %p139 = scmp.eq.s32.totalorder %s14, 0
    %p140 = por %p138, %p139
    %p141 = scmp.ne.s32.totalorder %s127, %s128
    %p142 = scmp.eq.s32.totalorder %s15, 1
    %p143 = por %p141, %p142
    %p145 = scmp.ne.s32.totalorder %s128, %s144
    %p146 = scmp.eq.s32.totalorder %s15, 0
    %p147 = por %p145, %p146
    %p148 = scmp.le.s32.totalorder 1, %s9
    %p149 = scmp.lt.s32.totalorder %s9, 3
    %p150 = pnand %p148, %p149
    %p151 = pneg %p150
    // Predicated region
    $region9: #{self_attention.3} parent=5 // pred_check
      _
    $region10: #{self_attention.3} parent=5 // pred_check_branch
      %153 = sbr.rel (%p150) target = $region12
    $region11: #{self_attention.3} parent=5 // pred_region
      %s154 = ssub.s32 %s9, 1
    $region12: #{self_attention.3} parent=5 // pred_fallthru
      _
    %p155 = scmp.lt.s32.totalorder %s9, 2
    // Predicated region
    $region13: #{self_attention.3} parent=5 // pred_check
      %p156 = pneg %p155
    $region14: #{self_attention.3} parent=5 // pred_check_branch
      %158 = sbr.rel (%p156) target = $region16
    $region15: #{self_attention.3} parent=5 // pred_region
      // Predicated region
      $region17: #{self_attention.3} parent=15 // pred_check
        %p159 = pneg %p50
      $region18: #{self_attention.3} parent=15 // pred_check_branch
        %161 = sbr.rel (%p159) target = $region20
      $region19: #{self_attention.3} parent=15 // pred_region
        %s162 = smul.u32 2, %s17
        %p163 = scmp.lt.s32.totalorder %s16, 1
        %s164 = scalar_select %p163, %s16, 1
        %p165 = scmp.lt.s32.totalorder %s162, 1
        %s166 = scalar_select %p165, %s162, 1
        %s167 = smul.addr %s164, 8
        %s168 = sadd.s32 %s166, %s167
        %s169 = smul.addr %s168, 4
        %s170 = scalar_lea.vmem %s0, %s169
        %s171 = smul.u32 2, %s17
      $region20: #{self_attention.3} parent=15 // pred_fallthru
        _
      // Predicated region
      $region21: #{self_attention.3} parent=15 // pred_check
        %p172 = pneg %p78
      $region22: #{self_attention.3} parent=15 // pred_check_branch
        %174 = sbr.rel (%p172) target = $region24
      $region23: #{self_attention.3} parent=15 // pred_region
        %s175 = smul.u32 2, %s18
        %p176 = scmp.lt.s32.totalorder %s16, 1
        %s177 = scalar_select %p176, %s16, 1
        %p178 = scmp.lt.s32.totalorder %s175, 1
        %s179 = scalar_select %p178, %s175, 1
        %s180 = smul.addr %s177, 8
        %s181 = sadd.s32 %s179, %s180
        %s182 = smul.addr %s181, 4
        %s183 = scalar_lea.vmem %s1, %s182
        %s184 = smul.u32 2, %s18
      $region24: #{self_attention.3} parent=15 // pred_fallthru
        _
      // Predicated region
      $region25: #{self_attention.3} parent=15 // pred_check
        %p185 = pneg %p106
      $region26: #{self_attention.3} parent=15 // pred_check_branch
        %187 = sbr.rel (%p185) target = $region28
      $region27: #{self_attention.3} parent=15 // pred_region
        %s188 = smul.u32 2, %s18
        %p189 = scmp.lt.s32.totalorder %s16, 1
        %s190 = scalar_select %p189, %s16, 1
        %p191 = scmp.lt.s32.totalorder %s188, 1
        %s192 = scalar_select %p191, %s188, 1
        %s193 = smul.addr %s190, 8
        %s194 = sadd.s32 %s192, %s193
        %s195 = smul.addr %s194, 4
        %s196 = scalar_lea.vmem %s2, %s195
        %s197 = smul.u32 2, %s18
      $region28: #{self_attention.3} parent=15 // pred_fallthru
        _
    $region16: #{self_attention.3} parent=5 // pred_fallthru
      _
    %p198 = scmp.le.s32.totalorder 1, %s9
    %p199 = scmp.lt.s32.totalorder %s9, 3
    %p200 = pnand %p198, %p199
    %p201 = pneg %p200
    // Predicated region
    $region29: #{self_attention.3} parent=5 // pred_check
      _
    $region30: #{self_attention.3} parent=5 // pred_check_branch
      %203 = sbr.rel (%p200) target = $region32
    $region31: #{self_attention.3} parent=5 // pred_region
      %s204 = ssub.s32 %s9, 1
      %s205 = smul.u32 2, %s20
      %p206 = scmp.lt.s32.totalorder %s19, 1
      %s207 = scalar_select %p206, %s19, 1
      %p208 = scmp.lt.s32.totalorder %s205, 1
      %s209 = scalar_select %p208, %s205, 1
      %s210 = smul.addr %s207, 8
      %s211 = sadd.s32 %s209, %s210
      %s212 = smul.addr %s211, 4
      %s213 = scalar_lea.vmem %s0, %s212
      %p214 = pneg %p56
      %p215 = pneg %p53
      %s216 = smul.u32 2, %s21
      %p217 = scmp.lt.s32.totalorder %s19, 1
      %s218 = scalar_select %p217, %s19, 1
      %p219 = scmp.lt.s32.totalorder %s216, 1
      %s220 = scalar_select %p219, %s216, 1
      %s221 = smul.addr %s218, 8
      %s222 = sadd.s32 %s220, %s221
      %s223 = smul.addr %s222, 4
      %s224 = scalar_lea.vmem %s1, %s223
      %p225 = pneg %p84
      %p226 = pneg %p81
      %s227 = smul.u32 2, %s21
      %p228 = scmp.lt.s32.totalorder %s19, 1
      %s229 = scalar_select %p228, %s19, 1
      %p230 = scmp.lt.s32.totalorder %s227, 1
      %s231 = scalar_select %p230, %s227, 1
      %s232 = smul.addr %s229, 8
      %s233 = sadd.s32 %s231, %s232
      %s234 = smul.addr %s233, 4
      %s235 = scalar_lea.vmem %s2, %s234
      %p236 = pneg %p112
      %p237 = pneg %p109
      %p238 = pneg %p140
      %p239 = pneg %p137
      %s240 = smul.u32 2, %s20
      %p241 = scmp.lt.s32.totalorder %s19, 1
      %s242 = scalar_select %p241, %s19, 1
      %p243 = scmp.lt.s32.totalorder %s240, 1
      %s244 = scalar_select %p243, %s240, 1
      %s245 = smul.addr %s242, 8
      %s246 = sadd.s32 %s244, %s245
      %s247 = smul.addr %s246, 8
      %s248 = scalar_lea.vmem %s3, %s247
      %s249 = smul.u32 2, %s20
      %p250 = scmp.lt.s32.totalorder %s19, 1
      %s251 = scalar_select %p250, %s19, 1
      %p252 = scmp.lt.s32.totalorder %s249, 1
      %s253 = scalar_select %p252, %s249, 1
      %s254 = smul.addr %s251, 8
      %s255 = sadd.s32 %s253, %s254
      %s256 = smul.addr %s255, 4
      %s257 = scalar_lea.vmem %s0, %s256
      %s258 = smul.u32 2, %s20
      %s259 = smul.u32 2, %s21
      %p260 = scmp.lt.s32.totalorder %s19, 1
      %s261 = scalar_select %p260, %s19, 1
      %p262 = scmp.lt.s32.totalorder %s259, 1
      %s263 = scalar_select %p262, %s259, 1
      %s264 = smul.addr %s261, 8
      %s265 = sadd.s32 %s263, %s264
      %s266 = smul.addr %s265, 4
      %s267 = scalar_lea.vmem %s1, %s266
      %s268 = smul.u32 2, %s21
      %s269 = smul.u32 2, %s21
      %p270 = scmp.lt.s32.totalorder %s19, 1
      %s271 = scalar_select %p270, %s19, 1
      %p272 = scmp.lt.s32.totalorder %s269, 1
      %s273 = scalar_select %p272, %s269, 1
      %s274 = smul.addr %s271, 8
      %s275 = sadd.s32 %s273, %s274
      %s276 = smul.addr %s275, 4
      %s277 = scalar_lea.vmem %s2, %s276
      %s278 = smul.u32 2, %s21
      %s279 = smul.u32 2, %s20
      %p280 = scmp.lt.s32.totalorder %s19, 1
      %s281 = scalar_select %p280, %s19, 1
      %p282 = scmp.lt.s32.totalorder %s279, 1
      %s283 = scalar_select %p282, %s279, 1
      %s284 = smul.addr %s281, 8
      %s285 = sadd.s32 %s283, %s284
      %s286 = smul.addr %s285, 8
      %s287 = scalar_lea.vmem %s3, %s286
      %s288 = smul.u32 2, %s20
      %p290 = scmp.eq.s32.totalorder %s21, 0
      // Predicated region
      $region33: #{self_attention.3} parent=31 // pred_check
        %p291 = pneg %p290
      $region34: #{self_attention.3} parent=31 // pred_check_branch
        %293 = sbr.rel (%p291) target = $region36
      $region35: #{self_attention.3} parent=31 // pred_region
        %vm294 = vcmask 7168
        %295 = vst.msk [vmem:[#allocation2] sm:$0xff] %vm294, -1e+30
        %296 = vst.msk [vmem:[#allocation2 + $0x8] sm:$0xff] %vm294, -1e+30
        %297 = vst.msk [vmem:[#allocation2 + $0x10] sm:$0xff] %vm294, -1e+30
        %298 = vst.msk [vmem:[#allocation2 + $0x18] sm:$0xff] %vm294, -1e+30
        %299 = vst.msk [vmem:[#allocation2 + $0x20] sm:$0xff] %vm294, -1e+30
        %300 = vst.msk [vmem:[#allocation2 + $0x28] sm:$0xff] %vm294, -1e+30
        %301 = vst.msk [vmem:[#allocation2 + $0x30] sm:$0xff] %vm294, -1e+30
        %302 = vst.msk [vmem:[#allocation2 + $0x38] sm:$0xff] %vm294, -1e+30
        %303 = vst.msk [vmem:[#allocation3] sm:$0xff] %vm294, 0.0
        %304 = vst.msk [vmem:[#allocation3 + $0x8] sm:$0xff] %vm294, 0.0
        %305 = vst.msk [vmem:[#allocation3 + $0x10] sm:$0xff] %vm294, 0.0
        %306 = vst.msk [vmem:[#allocation3 + $0x18] sm:$0xff] %vm294, 0.0
        %307 = vst.msk [vmem:[#allocation3 + $0x20] sm:$0xff] %vm294, 0.0
        %308 = vst.msk [vmem:[#allocation3 + $0x28] sm:$0xff] %vm294, 0.0
        %309 = vst.msk [vmem:[#allocation3 + $0x30] sm:$0xff] %vm294, 0.0
        %310 = vst.msk [vmem:[#allocation3 + $0x38] sm:$0xff] %vm294, 0.0
        %vm311 = vcmask 64512
        %312 = vst.msk [vmem:[#allocation4] sm:$0xff] %vm311, 0.0
        %313 = vst.msk [vmem:[#allocation4 + $0x8] sm:$0xff] %vm311, 0.0
        %314 = vst.msk [vmem:[#allocation4 + $0x10] sm:$0xff] %vm311, 0.0
        %315 = vst.msk [vmem:[#allocation4 + $0x18] sm:$0xff] %vm311, 0.0
        %316 = vst.msk [vmem:[#allocation4 + $0x20] sm:$0xff] %vm311, 0.0
        %317 = vst.msk [vmem:[#allocation4 + $0x28] sm:$0xff] %vm311, 0.0
        %318 = vst.msk [vmem:[#allocation4 + $0x30] sm:$0xff] %vm311, 0.0
        %319 = vst.msk [vmem:[#allocation4 + $0x38] sm:$0xff] %vm311, 0.0
      $region36: #{self_attention.3} parent=31 // pred_fallthru
        _
      %v320 = vld [vmem:[%s257] sm:$0xf]
      %v321 = vld [vmem:[%s257 + $0x4] sm:$0xf]
      %v322 = vld [vmem:[%s257 + $0x8] sm:$0xf]
      %v323 = vld [vmem:[%s257 + $0xc] sm:$0xf]
      %v324 = vld [vmem:[%s257 + $0x10] sm:$0xf]
      %v325 = vld [vmem:[%s257 + $0x14] sm:$0xf]
      %v326 = vld [vmem:[%s257 + $0x18] sm:$0xf]
      %v327 = vld [vmem:[%s257 + $0x1c] sm:$0xf]
      %v328 = vld [vmem:[%s267] sm:$0xf]
      %v329 = vld [vmem:[%s267 + $0x4] sm:$0xf]
      %v330 = vld [vmem:[%s267 + $0x8] sm:$0xf]
      %v331 = vld [vmem:[%s267 + $0xc] sm:$0xf]
      %v332 = vld [vmem:[%s267 + $0x10] sm:$0xf]
      %v333 = vld [vmem:[%s267 + $0x14] sm:$0xf]
      %v334 = vld [vmem:[%s267 + $0x18] sm:$0xf]
      %v335 = vld [vmem:[%s267 + $0x1c] sm:$0xf]
      %v338 = vunpack.c.l.b16 %v320
      %v339 = vunpack.c.l.b16 %v321
      %v340 = vpack.c.b16 %v339, %v338
      %v343 = vunpack.c.l.b16 %v328
      %v344 = vunpack.c.l.b16 %v329
      %v345 = vpack.c.b16 %v344, %v343
      %vm346 = vcmask 64512
      %v348 = vsel %vm346, %v340, 0
      %v351 = vsel %vm346, %v345, 0
      %353 = vmatpush.bf16.xpose.msra.mxu0 0
      %354 = vmatpush.bf16.xpose.msra.mxu0 0
      %355 = vmatpush.bf16.xpose.msra.mxu0 0
      %356 = vmatpush.bf16.xpose.msra.mxu0 0
      %357 = vmatpush.bf16.xpose.msra.mxu0 0
      %358 = vmatpush.bf16.xpose.msra.mxu0 0
      %359 = vmatpush.bf16.xpose.msra.mxu0 0
      %360 = vmatpush.bf16.xpose.msra.mxu0 %v351
      %361 = vmatmul.bf16.gmra.mxu0 %v348
      %v362 = vpop.f32.mrf.mxu0
      %v363 = vadd.f32 0.0, %v362
      %v364 = vpop.f32.mrf.mxu0
      %v365 = vadd.f32 0.0, %v364
      %366 = vdwg.mxu0
      %v369 = vunpack.c.l.b16 %v322
      %v370 = vunpack.c.l.b16 %v323
      %v371 = vpack.c.b16 %v370, %v369
      %v374 = vunpack.c.l.b16 %v330
      %v375 = vunpack.c.l.b16 %v331
      %v376 = vpack.c.b16 %v375, %v374
      %v378 = vsel %vm346, %v371, 0
      %v381 = vsel %vm346, %v376, 0
      %383 = vmatpush.bf16.xpose.msra.mxu0 0
      %384 = vmatpush.bf16.xpose.msra.mxu0 0
      %385 = vmatpush.bf16.xpose.msra.mxu0 0
      %386 = vmatpush.bf16.xpose.msra.mxu0 0
      %387 = vmatpush.bf16.xpose.msra.mxu0 0
      %388 = vmatpush.bf16.xpose.msra.mxu0 0
      %389 = vmatpush.bf16.xpose.msra.mxu0 0
      %390 = vmatpush.bf16.xpose.msra.mxu0 %v381
      %391 = vmatmul.bf16.gmra.mxu0 %v378
      %v392 = vpop.f32.mrf.mxu0
      %v393 = vadd.f32 0.0, %v392
      %v394 = vpop.f32.mrf.mxu0
      %v395 = vadd.f32 0.0, %v394
      %396 = vdwg.mxu0
      %v399 = vunpack.c.l.b16 %v324
      %v400 = vunpack.c.l.b16 %v325
      %v401 = vpack.c.b16 %v400, %v399
      %v404 = vunpack.c.l.b16 %v332
      %v405 = vunpack.c.l.b16 %v333
      %v406 = vpack.c.b16 %v405, %v404
      %v408 = vsel %vm346, %v401, 0
      %v411 = vsel %vm346, %v406, 0
      %413 = vmatpush.bf16.xpose.msra.mxu0 0
      %414 = vmatpush.bf16.xpose.msra.mxu0 0
      %415 = vmatpush.bf16.xpose.msra.mxu0 0
      %416 = vmatpush.bf16.xpose.msra.mxu0 0
      %417 = vmatpush.bf16.xpose.msra.mxu0 0
      %418 = vmatpush.bf16.xpose.msra.mxu0 0
      %419 = vmatpush.bf16.xpose.msra.mxu0 0
      %420 = vmatpush.bf16.xpose.msra.mxu0 %v411
      %421 = vmatmul.bf16.gmra.mxu0 %v408
      %v422 = vpop.f32.mrf.mxu0
      %v423 = vadd.f32 0.0, %v422
      %v424 = vpop.f32.mrf.mxu0
      %v425 = vadd.f32 0.0, %v424
      %426 = vdwg.mxu0
      %v429 = vunpack.c.l.b16 %v326
      %v430 = vunpack.c.l.b16 %v327
      %v431 = vpack.c.b16 %v430, %v429
      %v434 = vunpack.c.l.b16 %v334
      %v435 = vunpack.c.l.b16 %v335
      %v436 = vpack.c.b16 %v435, %v434
      %v438 = vsel %vm346, %v431, 0
      %v441 = vsel %vm346, %v436, 0
      %443 = vmatpush.bf16.xpose.msra.mxu0 0
      %444 = vmatpush.bf16.xpose.msra.mxu0 0
      %445 = vmatpush.bf16.xpose.msra.mxu0 0
      %446 = vmatpush.bf16.xpose.msra.mxu0 0
      %447 = vmatpush.bf16.xpose.msra.mxu0 0
      %448 = vmatpush.bf16.xpose.msra.mxu0 0
      %449 = vmatpush.bf16.xpose.msra.mxu0 0
      %450 = vmatpush.bf16.xpose.msra.mxu0 %v441
      %451 = vmatmul.bf16.gmra.mxu0 %v438
      %v452 = vpop.f32.mrf.mxu0
      %v453 = vadd.f32 0.0, %v452
      %v454 = vpop.f32.mrf.mxu0
      %v455 = vadd.f32 0.0, %v454
      %456 = vdwg.mxu0
      %v457 = vld [vmem:[#allocation2] sm:$0xff]
      %v458 = vld [vmem:[#allocation2 + $0x8] sm:$0xff]
      %v459 = vld [vmem:[#allocation2 + $0x10] sm:$0xff]
      %v460 = vld [vmem:[#allocation2 + $0x18] sm:$0xff]
      %v461 = vld [vmem:[#allocation2 + $0x20] sm:$0xff]
      %v462 = vld [vmem:[#allocation2 + $0x28] sm:$0xff]
      %v463 = vld [vmem:[#allocation2 + $0x30] sm:$0xff]
      %v464 = vld [vmem:[#allocation2 + $0x38] sm:$0xff]
      %vm465 = vcmask 130048
      %v466 = vsel %vm465, %v363, -inf
      %467 = vmax.xlane.f32.xlu0 %v466
      %v468 = vpop.xlane.xlu0 %467
      %v469 = vsel %vm465, %v365, -inf
      %470 = vmax.xlane.f32.xlu0 %v469
      %v471 = vpop.xlane.xlu0 %470
      %v472 = vsel %vm465, %v393, -inf
      %473 = vmax.xlane.f32.xlu0 %v472
      %v474 = vpop.xlane.xlu0 %473
      %v475 = vsel %vm465, %v395, -inf
      %476 = vmax.xlane.f32.xlu0 %v475
      %v477 = vpop.xlane.xlu0 %476
      %v478 = vsel %vm465, %v423, -inf
      %479 = vmax.xlane.f32.xlu0 %v478
      %v480 = vpop.xlane.xlu0 %479
      %v481 = vsel %vm465, %v425, -inf
      %482 = vmax.xlane.f32.xlu0 %v481
      %v483 = vpop.xlane.xlu0 %482
      %v484 = vsel %vm465, %v453, -inf
      %485 = vmax.xlane.f32.xlu0 %v484
      %v486 = vpop.xlane.xlu0 %485
      %v487 = vsel %vm465, %v455, -inf
      %488 = vmax.xlane.f32.xlu0 %v487
      %v489 = vpop.xlane.xlu0 %488
      %v490 = vmax.f32 %v457, %v468
      %v491 = vmax.f32 %v458, %v471
      %v492 = vmax.f32 %v459, %v474
      %v493 = vmax.f32 %v460, %v477
      %v494 = vmax.f32 %v461, %v480
      %v495 = vmax.f32 %v462, %v483
      %v496 = vmax.f32 %v463, %v486
      %v497 = vmax.f32 %v464, %v489
      %v498 = vsub.f32 %v457, %v490
      %v499 = vsub.f32 %v458, %v491
      %v500 = vsub.f32 %v459, %v492
      %v501 = vsub.f32 %v460, %v493
      %v502 = vsub.f32 %v461, %v494
      %v503 = vsub.f32 %v462, %v495
      %v504 = vsub.f32 %v463, %v496
      %v505 = vsub.f32 %v464, %v497
      %v506 = vmul.f32 %v498, 1.442695
      %v507 = vpow.pop %v506
      %v508 = vmul.f32 %v499, 1.442695
      %v509 = vpow.pop %v508
      %v510 = vmul.f32 %v500, 1.442695
      %v511 = vpow.pop %v510
      %v512 = vmul.f32 %v501, 1.442695
      %v513 = vpow.pop %v512
      %v514 = vmul.f32 %v502, 1.442695
      %v515 = vpow.pop %v514
      %v516 = vmul.f32 %v503, 1.442695
      %v517 = vpow.pop %v516
      %v518 = vmul.f32 %v504, 1.442695
      %v519 = vpow.pop %v518
      %v520 = vmul.f32 %v505, 1.442695
      %v521 = vpow.pop %v520
      %523 = vset.pattern.permute.xlu0 0
      %524 = vperm.xlu0 %523, %v490
      %v525 = vpop.permute.xlu0 %524
      %528 = vset.pattern.permute.xlu0 0
      %529 = vperm.xlu0 %528, %v491
      %v530 = vpop.permute.xlu0 %529
      %533 = vset.pattern.permute.xlu0 0
      %534 = vperm.xlu0 %533, %v492
      %v535 = vpop.permute.xlu0 %534
      %538 = vset.pattern.permute.xlu0 0
      %539 = vperm.xlu0 %538, %v493
      %v540 = vpop.permute.xlu0 %539
      %543 = vset.pattern.permute.xlu0 0
      %544 = vperm.xlu0 %543, %v494
      %v545 = vpop.permute.xlu0 %544
      %548 = vset.pattern.permute.xlu0 0
      %549 = vperm.xlu0 %548, %v495
      %v550 = vpop.permute.xlu0 %549
      %553 = vset.pattern.permute.xlu0 0
      %554 = vperm.xlu0 %553, %v496
      %v555 = vpop.permute.xlu0 %554
      %558 = vset.pattern.permute.xlu0 0
      %559 = vperm.xlu0 %558, %v497
      %v560 = vpop.permute.xlu0 %559
      %v562 = vsub.f32 %v363, %v525
      %v563 = vsub.f32 %v365, %v530
      %v564 = vsub.f32 %v393, %v535
      %v565 = vsub.f32 %v395, %v540
      %v566 = vsub.f32 %v423, %v545
      %v567 = vsub.f32 %v425, %v550
      %v568 = vsub.f32 %v453, %v555
      %v569 = vsub.f32 %v455, %v560
      %v570 = vmul.f32 %v562, 1.442695
      %v571 = vpow.pop %v570
      %v572 = vmul.f32 %v563, 1.442695
      %v573 = vpow.pop %v572
      %v574 = vmul.f32 %v564, 1.442695
      %v575 = vpow.pop %v574
      %v576 = vmul.f32 %v565, 1.442695
      %v577 = vpow.pop %v576
      %v578 = vmul.f32 %v566, 1.442695
      %v579 = vpow.pop %v578
      %v580 = vmul.f32 %v567, 1.442695
      %v581 = vpow.pop %v580
      %v582 = vmul.f32 %v568, 1.442695
      %v583 = vpow.pop %v582
      %v584 = vmul.f32 %v569, 1.442695
      %v585 = vpow.pop %v584
      %v586 = vld [vmem:[#allocation3] sm:$0xff]
      %v587 = vld [vmem:[#allocation3 + $0x8] sm:$0xff]
      %v588 = vld [vmem:[#allocation3 + $0x10] sm:$0xff]
      %v589 = vld [vmem:[#allocation3 + $0x18] sm:$0xff]
      %v590 = vld [vmem:[#allocation3 + $0x20] sm:$0xff]
      %v591 = vld [vmem:[#allocation3 + $0x28] sm:$0xff]
      %v592 = vld [vmem:[#allocation3 + $0x30] sm:$0xff]
      %v593 = vld [vmem:[#allocation3 + $0x38] sm:$0xff]
      %v594 = vmul.f32 %v507, %v586
      %v595 = vmul.f32 %v509, %v587
      %v596 = vmul.f32 %v511, %v588
      %v597 = vmul.f32 %v513, %v589
      %v598 = vmul.f32 %v515, %v590
      %v599 = vmul.f32 %v517, %v591
      %v600 = vmul.f32 %v519, %v592
      %v601 = vmul.f32 %v521, %v593
      %v602 = vsel %vm465, %v571, 0.0
      %603 = vadd.xlane.f32.xlu0 %v602
      %v604 = vpop.xlane.xlu0 %603
      %v605 = vsel %vm465, %v573, 0.0
      %606 = vadd.xlane.f32.xlu0 %v605
      %v607 = vpop.xlane.xlu0 %606
      %v608 = vsel %vm465, %v575, 0.0
      %609 = vadd.xlane.f32.xlu0 %v608
      %v610 = vpop.xlane.xlu0 %609
      %v611 = vsel %vm465, %v577, 0.0
      %612 = vadd.xlane.f32.xlu0 %v611
      %v613 = vpop.xlane.xlu0 %612
      %v614 = vsel %vm465, %v579, 0.0
      %615 = vadd.xlane.f32.xlu0 %v614
      %v616 = vpop.xlane.xlu0 %615
      %v617 = vsel %vm465, %v581, 0.0
      %618 = vadd.xlane.f32.xlu0 %v617
      %v619 = vpop.xlane.xlu0 %618
      %v620 = vsel %vm465, %v583, 0.0
      %621 = vadd.xlane.f32.xlu0 %v620
      %v622 = vpop.xlane.xlu0 %621
      %v623 = vsel %vm465, %v585, 0.0
      %624 = vadd.xlane.f32.xlu0 %v623
      %v625 = vpop.xlane.xlu0 %624
      %v626 = vadd.f32 %v594, %v604
      %v627 = vadd.f32 %v595, %v607
      %v628 = vadd.f32 %v596, %v610
      %v629 = vadd.f32 %v597, %v613
      %v630 = vadd.f32 %v598, %v616
      %v631 = vadd.f32 %v599, %v619
      %v632 = vadd.f32 %v600, %v622
      %v633 = vadd.f32 %v601, %v625
      %vm634 = vcmask 7168
      %635 = vst.msk [vmem:[#allocation3] sm:$0xff] %vm634, %v626
      %636 = vst.msk [vmem:[#allocation3 + $0x8] sm:$0xff] %vm634, %v627
      %637 = vst.msk [vmem:[#allocation3 + $0x10] sm:$0xff] %vm634, %v628
      %638 = vst.msk [vmem:[#allocation3 + $0x18] sm:$0xff] %vm634, %v629
      %639 = vst.msk [vmem:[#allocation3 + $0x20] sm:$0xff] %vm634, %v630
      %640 = vst.msk [vmem:[#allocation3 + $0x28] sm:$0xff] %vm634, %v631
      %641 = vst.msk [vmem:[#allocation3 + $0x30] sm:$0xff] %vm634, %v632
      %642 = vst.msk [vmem:[#allocation3 + $0x38] sm:$0xff] %vm634, %v633
      %v643 = vld [vmem:[#allocation4] sm:$0xff]
      %v644 = vld [vmem:[#allocation4 + $0x8] sm:$0xff]
      %v645 = vld [vmem:[#allocation4 + $0x10] sm:$0xff]
      %v646 = vld [vmem:[#allocation4 + $0x18] sm:$0xff]
      %v647 = vld [vmem:[#allocation4 + $0x20] sm:$0xff]
      %v648 = vld [vmem:[#allocation4 + $0x28] sm:$0xff]
      %v649 = vld [vmem:[#allocation4 + $0x30] sm:$0xff]
      %v650 = vld [vmem:[#allocation4 + $0x38] sm:$0xff]
      %652 = vset.pattern.permute.xlu0 0
      %653 = vperm.xlu0 %652, %v507
      %v654 = vpop.permute.xlu0 %653
      %657 = vset.pattern.permute.xlu0 0
      %658 = vperm.xlu0 %657, %v509
      %v659 = vpop.permute.xlu0 %658
      %662 = vset.pattern.permute.xlu0 0
      %663 = vperm.xlu0 %662, %v511
      %v664 = vpop.permute.xlu0 %663
      %667 = vset.pattern.permute.xlu0 0
      %668 = vperm.xlu0 %667, %v513
      %v669 = vpop.permute.xlu0 %668
      %672 = vset.pattern.permute.xlu0 0
      %673 = vperm.xlu0 %672, %v515
      %v674 = vpop.permute.xlu0 %673
      %677 = vset.pattern.permute.xlu0 0
      %678 = vperm.xlu0 %677, %v517
      %v679 = vpop.permute.xlu0 %678
      %682 = vset.pattern.permute.xlu0 0
      %683 = vperm.xlu0 %682, %v519
      %v684 = vpop.permute.xlu0 %683
      %687 = vset.pattern.permute.xlu0 0
      %688 = vperm.xlu0 %687, %v521
      %v689 = vpop.permute.xlu0 %688
      %v691 = vmul.f32 %v654, %v643
      %v692 = vmul.f32 %v659, %v644
      %v693 = vmul.f32 %v664, %v645
      %v694 = vmul.f32 %v669, %v646
      %v695 = vmul.f32 %v674, %v647
      %v696 = vmul.f32 %v679, %v648
      %v697 = vmul.f32 %v684, %v649
      %v698 = vmul.f32 %v689, %v650
      %v699 = vpack.c.bf16 %v571, %v571
      %v700 = vpack.c.bf16 %v573, %v573
      %v701 = vpack.c.bf16 %v575, %v575
      %v702 = vpack.c.bf16 %v577, %v577
      %v703 = vpack.c.bf16 %v579, %v579
      %v704 = vpack.c.bf16 %v581, %v581
      %v705 = vpack.c.bf16 %v583, %v583
      %v706 = vpack.c.bf16 %v585, %v585
      %v707 = vld [vmem:[%s277] sm:$0xf]
      %v708 = vld [vmem:[%s277 + $0x4] sm:$0xf]
      %v709 = vld [vmem:[%s277 + $0x8] sm:$0xf]
      %v710 = vld [vmem:[%s277 + $0xc] sm:$0xf]
      %v711 = vld [vmem:[%s277 + $0x10] sm:$0xf]
      %v712 = vld [vmem:[%s277 + $0x14] sm:$0xf]
      %v713 = vld [vmem:[%s277 + $0x18] sm:$0xf]
      %v714 = vld [vmem:[%s277 + $0x1c] sm:$0xf]
      %v717 = vunpack.c.l.b16 %v699
      %v718 = vunpack.c.l.b16 %v700
      %v719 = vpack.c.b16 %v718, %v717
      %v722 = vunpack.c.l.b16 %v707
      %v723 = vunpack.c.l.b16 %v708
      %v724 = vpack.c.b16 %v723, %v722
      %v727 = vsel %vm465, %v719, 0
      %729 = vmatpush.bf16.msra.mxu0 0
      %730 = vmatpush.bf16.msra.mxu0 0
      %731 = vmatpush.bf16.msra.mxu0 0
      %732 = vmatpush.bf16.msra.mxu0 0
      %733 = vmatpush.bf16.msra.mxu0 0
      %734 = vmatpush.bf16.msra.mxu0 0
      %735 = vmatpush.bf16.msra.mxu0 0
      %736 = vmatpush.bf16.msra.mxu0 %v724
      %737 = vmatmul.bf16.gmra.mxu0 %v727
      %v738 = vpop.f32.mrf.mxu0
      %v739 = vadd.f32 0.0, %v738
      %v740 = vpop.f32.mrf.mxu0
      %v741 = vadd.f32 0.0, %v740
      %742 = vdwg.mxu0
      %v745 = vunpack.c.l.b16 %v701
      %v746 = vunpack.c.l.b16 %v702
      %v747 = vpack.c.b16 %v746, %v745
      %v750 = vunpack.c.l.b16 %v709
      %v751 = vunpack.c.l.b16 %v710
      %v752 = vpack.c.b16 %v751, %v750
      %v755 = vsel %vm465, %v747, 0
      %757 = vmatpush.bf16.msra.mxu0 0
      %758 = vmatpush.bf16.msra.mxu0 0
      %759 = vmatpush.bf16.msra.mxu0 0
      %760 = vmatpush.bf16.msra.mxu0 0
      %761 = vmatpush.bf16.msra.mxu0 0
      %762 = vmatpush.bf16.msra.mxu0 0
      %763 = vmatpush.bf16.msra.mxu0 0
      %764 = vmatpush.bf16.msra.mxu0 %v752
      %765 = vmatmul.bf16.gmra.mxu0 %v755
      %v766 = vpop.f32.mrf.mxu0
      %v767 = vadd.f32 0.0, %v766
      %v768 = vpop.f32.mrf.mxu0
      %v769 = vadd.f32 0.0, %v768
      %770 = vdwg.mxu0
      %v773 = vunpack.c.l.b16 %v703
      %v774 = vunpack.c.l.b16 %v704
      %v775 = vpack.c.b16 %v774, %v773
      %v778 = vunpack.c.l.b16 %v711
      %v779 = vunpack.c.l.b16 %v712
      %v780 = vpack.c.b16 %v779, %v778
      %v783 = vsel %vm465, %v775, 0
      %785 = vmatpush.bf16.msra.mxu0 0
      %786 = vmatpush.bf16.msra.mxu0 0
      %787 = vmatpush.bf16.msra.mxu0 0
      %788 = vmatpush.bf16.msra.mxu0 0
      %789 = vmatpush.bf16.msra.mxu0 0
      %790 = vmatpush.bf16.msra.mxu0 0
      %791 = vmatpush.bf16.msra.mxu0 0
      %792 = vmatpush.bf16.msra.mxu0 %v780
      %793 = vmatmul.bf16.gmra.mxu0 %v783
      %v794 = vpop.f32.mrf.mxu0
      %v795 = vadd.f32 0.0, %v794
      %v796 = vpop.f32.mrf.mxu0
      %v797 = vadd.f32 0.0, %v796
      %798 = vdwg.mxu0
      %v801 = vunpack.c.l.b16 %v705
      %v802 = vunpack.c.l.b16 %v706
      %v803 = vpack.c.b16 %v802, %v801
      %v806 = vunpack.c.l.b16 %v713
      %v807 = vunpack.c.l.b16 %v714
      %v808 = vpack.c.b16 %v807, %v806
      %v811 = vsel %vm465, %v803, 0
      %813 = vmatpush.bf16.msra.mxu0 0
      %814 = vmatpush.bf16.msra.mxu0 0
      %815 = vmatpush.bf16.msra.mxu0 0
      %816 = vmatpush.bf16.msra.mxu0 0
      %817 = vmatpush.bf16.msra.mxu0 0
      %818 = vmatpush.bf16.msra.mxu0 0
      %819 = vmatpush.bf16.msra.mxu0 0
      %820 = vmatpush.bf16.msra.mxu0 %v808
      %821 = vmatmul.bf16.gmra.mxu0 %v811
      %v822 = vpop.f32.mrf.mxu0
      %v823 = vadd.f32 0.0, %v822
      %v824 = vpop.f32.mrf.mxu0
      %v825 = vadd.f32 0.0, %v824
      %826 = vdwg.mxu0
      %v827 = vadd.f32 %v691, %v739
      %v828 = vadd.f32 %v692, %v741
      %v829 = vadd.f32 %v693, %v767
      %v830 = vadd.f32 %v694, %v769
      %v831 = vadd.f32 %v695, %v795
      %v832 = vadd.f32 %v696, %v797
      %v833 = vadd.f32 %v697, %v823
      %v834 = vadd.f32 %v698, %v825
      %835 = vst.msk [vmem:[#allocation4] sm:$0xff] %vm346, %v827
      %836 = vst.msk [vmem:[#allocation4 + $0x8] sm:$0xff] %vm346, %v828
      %837 = vst.msk [vmem:[#allocation4 + $0x10] sm:$0xff] %vm346, %v829
      %838 = vst.msk [vmem:[#allocation4 + $0x18] sm:$0xff] %vm346, %v830
      %839 = vst.msk [vmem:[#allocation4 + $0x20] sm:$0xff] %vm346, %v831
      %840 = vst.msk [vmem:[#allocation4 + $0x28] sm:$0xff] %vm346, %v832
      %841 = vst.msk [vmem:[#allocation4 + $0x30] sm:$0xff] %vm346, %v833
      %842 = vst.msk [vmem:[#allocation4 + $0x38] sm:$0xff] %vm346, %v834
      %843 = vst.msk [vmem:[#allocation2] sm:$0xff] %vm634, %v490
      %844 = vst.msk [vmem:[#allocation2 + $0x8] sm:$0xff] %vm634, %v491
      %845 = vst.msk [vmem:[#allocation2 + $0x10] sm:$0xff] %vm634, %v492
      %846 = vst.msk [vmem:[#allocation2 + $0x18] sm:$0xff] %vm634, %v493
      %847 = vst.msk [vmem:[#allocation2 + $0x20] sm:$0xff] %vm634, %v494
      %848 = vst.msk [vmem:[#allocation2 + $0x28] sm:$0xff] %vm634, %v495
      %849 = vst.msk [vmem:[#allocation2 + $0x30] sm:$0xff] %vm634, %v496
      %850 = vst.msk [vmem:[#allocation2 + $0x38] sm:$0xff] %vm634, %v497
      // Predicated region
      $region37: #{self_attention.3} parent=31 // pred_check
        %p851 = pneg %p290
      $region38: #{self_attention.3} parent=31 // pred_check_branch
        %853 = sbr.rel (%p851) target = $region40
      $region39: #{self_attention.3} parent=31 // pred_region
        %v854 = vld [vmem:[#allocation3] sm:$0xff]
        %v855 = vld [vmem:[#allocation3 + $0x8] sm:$0xff]
        %v856 = vld [vmem:[#allocation3 + $0x10] sm:$0xff]
        %v857 = vld [vmem:[#allocation3 + $0x18] sm:$0xff]
        %v858 = vld [vmem:[#allocation3 + $0x20] sm:$0xff]
        %v859 = vld [vmem:[#allocation3 + $0x28] sm:$0xff]
        %v860 = vld [vmem:[#allocation3 + $0x30] sm:$0xff]
        %v861 = vld [vmem:[#allocation3 + $0x38] sm:$0xff]
        %v862 = vrcp.pop %v854
        %v863 = vrcp.pop %v855
        %v864 = vrcp.pop %v856
        %v865 = vrcp.pop %v857
        %v866 = vrcp.pop %v858
        %v867 = vrcp.pop %v859
        %v868 = vrcp.pop %v860
        %v869 = vrcp.pop %v861
        %v870 = vld [vmem:[#allocation4] sm:$0xff]
        %v871 = vld [vmem:[#allocation4 + $0x8] sm:$0xff]
        %v872 = vld [vmem:[#allocation4 + $0x10] sm:$0xff]
        %v873 = vld [vmem:[#allocation4 + $0x18] sm:$0xff]
        %v874 = vld [vmem:[#allocation4 + $0x20] sm:$0xff]
        %v875 = vld [vmem:[#allocation4 + $0x28] sm:$0xff]
        %v876 = vld [vmem:[#allocation4 + $0x30] sm:$0xff]
        %v877 = vld [vmem:[#allocation4 + $0x38] sm:$0xff]
        %879 = vset.pattern.permute.xlu0 0
        %880 = vperm.xlu0 %879, %v862
        %v881 = vpop.permute.xlu0 %880
        %884 = vset.pattern.permute.xlu0 0
        %885 = vperm.xlu0 %884, %v863
        %v886 = vpop.permute.xlu0 %885
        %889 = vset.pattern.permute.xlu0 0
        %890 = vperm.xlu0 %889, %v864
        %v891 = vpop.permute.xlu0 %890
        %894 = vset.pattern.permute.xlu0 0
        %895 = vperm.xlu0 %894, %v865
        %v896 = vpop.permute.xlu0 %895
        %899 = vset.pattern.permute.xlu0 0
        %900 = vperm.xlu0 %899, %v866
        %v901 = vpop.permute.xlu0 %900
        %904 = vset.pattern.permute.xlu0 0
        %905 = vperm.xlu0 %904, %v867
        %v906 = vpop.permute.xlu0 %905
        %909 = vset.pattern.permute.xlu0 0
        %910 = vperm.xlu0 %909, %v868
        %v911 = vpop.permute.xlu0 %910
        %914 = vset.pattern.permute.xlu0 0
        %915 = vperm.xlu0 %914, %v869
        %v916 = vpop.permute.xlu0 %915
        %v918 = vmul.f32 %v870, %v881
        %v919 = vmul.f32 %v871, %v886
        %v920 = vmul.f32 %v872, %v891
        %v921 = vmul.f32 %v873, %v896
        %v922 = vmul.f32 %v874, %v901
        %v923 = vmul.f32 %v875, %v906
        %v924 = vmul.f32 %v876, %v911
        %v925 = vmul.f32 %v877, %v916
        %926 = vst.msk [vmem:[%s287] sm:$0xff] %vm346, %v918
        %927 = vst.msk [vmem:[%s287 + $0x8] sm:$0xff] %vm346, %v919
        %928 = vst.msk [vmem:[%s287 + $0x10] sm:$0xff] %vm346, %v920
        %929 = vst.msk [vmem:[%s287 + $0x18] sm:$0xff] %vm346, %v921
        %930 = vst.msk [vmem:[%s287 + $0x20] sm:$0xff] %vm346, %v922
        %931 = vst.msk [vmem:[%s287 + $0x28] sm:$0xff] %vm346, %v923
        %932 = vst.msk [vmem:[%s287 + $0x30] sm:$0xff] %vm346, %v924
        %933 = vst.msk [vmem:[%s287 + $0x38] sm:$0xff] %vm346, %v925
      $region40: #{self_attention.3} parent=31 // pred_fallthru
        _
      %s934 = smul.u32 2, %s20
      %p935 = scmp.lt.s32.totalorder %s19, 1
      %s936 = scalar_select %p935, %s19, 1
      %p937 = scmp.lt.s32.totalorder %s934, 1
      %s938 = scalar_select %p937, %s934, 1
      %s939 = smul.addr %s936, 8
      %s940 = sadd.s32 %s938, %s939
      %s941 = smul.addr %s940, 8
      %s942 = scalar_lea.vmem %s3, %s941
      // Predicated region
      $region41: #{self_attention.3} parent=31 // pred_check
        %p943 = pneg %p137
      $region42: #{self_attention.3} parent=31 // pred_check_branch
        %945 = sbr.rel (%p943) target = $region44
      $region43: #{self_attention.3} parent=31 // pred_region
        %s946 = smul.u32 2, %s20
      $region44: #{self_attention.3} parent=31 // pred_fallthru
        _
    $region32: #{self_attention.3} parent=5 // pred_fallthru
      _
    %p947 = scmp.le.s32.totalorder 2, %s9
    // Predicated region
    $region45: #{self_attention.3} parent=5 // pred_check
      %p948 = pneg %p947
    $region46: #{self_attention.3} parent=5 // pred_check_branch
      %950 = sbr.rel (%p948) target = $region48
    $region47: #{self_attention.3} parent=5 // pred_region
      %s951 = ssub.s32 %s9, 2
      // Predicated region
      $region49: #{self_attention.3} parent=47 // pred_check
        %p952 = pneg %p143
      $region50: #{self_attention.3} parent=47 // pred_check_branch
        %954 = sbr.rel (%p952) target = $region52
      $region51: #{self_attention.3} parent=47 // pred_region
        %s955 = smul.u32 2, %s23
        %p956 = scmp.lt.s32.totalorder %s22, 1
        %s957 = scalar_select %p956, %s22, 1
        %p958 = scmp.lt.s32.totalorder %s955, 1
        %s959 = scalar_select %p958, %s955, 1
        %s960 = smul.addr %s957, 8
        %s961 = sadd.s32 %s959, %s960
        %s962 = smul.addr %s961, 8
        %s963 = scalar_lea.vmem %s3, %s962
      $region52: #{self_attention.3} parent=47 // pred_fallthru
        _
    $region48: #{self_attention.3} parent=5 // pred_fallthru
      _
  $region6: #{self_attention.3} parent=0 // loop_footer
    %s13 = sadd.s32 1, %s9
  $region7: #{self_attention.3} parent=0 // loop_footer_branch
    %8 = sbr.rel target = $region3
  $region8: #{self_attention.3} parent=0 // loop_exit
    _

</llo_original>
